<compile_context>
chip_gen: v7x
topology: tpu7x:2x2x1
jax: 0.10.0
libtpu: 0.0.40
codegen_flags: <defaults>
</compile_context>

<pallas_src>
import functools

import jax
import jax.numpy as jnp
from jax import lax
from jax.experimental import pallas as pl
from jax.experimental.pallas import tpu as pltpu


def _label_smoothing_kernel(x_ref, tgt_ref, out_ref, acc_ref, *,
                            smoothing, n_total, tile_n, tiles_per_core,
                            needs_mask):
    core = pl.program_id(0)        # "parallel" axis (TensorCore split)
    step = pl.program_id(1)        # "arbitrary" reduction axis (batch tiles)

    @pl.when(step == 0)
    def _init():
        acc_ref[0] = jnp.float32(0.0)

    x = x_ref[...].astype(jnp.float32)                     # (tile_n, C) f32
    tn, c = x.shape

    # Numerically-stable logsumexp along the class (lane) axis, all 2D.
    m = jnp.max(x, axis=-1, keepdims=True)                 # (tile_n, 1)
    lse = jnp.log(jnp.sum(jnp.exp(x - m), axis=-1, keepdims=True)) + m

    # Fused weighted reduction (replaces separate x[target] and sum(x)):
    #   loss = lse - [conf * x[target] + (smoothing/C) * sum(x)]
    #        = lse - sum(x * w),   w = smoothing/C + conf * onehot(target)
    tgt = tgt_ref[...]                                      # (tile_n, 1) int32
    cls_idx = lax.broadcasted_iota(jnp.int32, (tn, c), 1)
    confidence = 1.0 - smoothing
    uniform = smoothing / c
    w = jnp.where(cls_idx == tgt, confidence + uniform, uniform)
    loss = lse - jnp.sum(x * w, axis=-1, keepdims=True)     # (tile_n, 1)

    if needs_mask:
        # Cheap (tile_n, 1) post-reduction mask only: rows past the true batch
        # size (padded last tile / clamped out-of-range tiles) are discarded.
        # jnp.where is a true select, so NaN/Inf from garbage rows cannot leak
        # into the accumulator.
        tile_idx = core * tiles_per_core + step
        row_ids = tile_idx * tile_n + lax.broadcasted_iota(jnp.int32, (tn, 1), 0)
        loss = jnp.where(row_ids < n_total, loss, 0.0)

    acc_ref[0] += jnp.sum(loss)

    @pl.when(step == pl.num_programs(1) - 1)
    def _finalize():
        # Per-core partial mean; the wrapper sums the per-core output blocks.
        partial = acc_ref[0] * jnp.float32(1.0 / n_total)
        out_ref[...] = jnp.full(out_ref.shape, partial, dtype=out_ref.dtype)


def _pick_vmem_limit_bytes():
    """Per-generation scoped-VMEM limit (v5e/v6e: 128 MiB phys, v7x: 64 MiB)."""
    cap = None
    try:
        cap = int(getattr(pltpu.get_tpu_info(), "vmem_capacity_bytes"))
    except Exception:
        cap = None
    if cap is None:
        return 32 * 1024 * 1024            # unknown chip: safe everywhere
    if cap >= 128 * 1024 * 1024:
        return 64 * 1024 * 1024            # v5e / v6e
    return 40 * 1024 * 1024                # v7x-class (64 MiB physical)


def label_smoothing_loss(x, target, smoothing=0.1, tile_n=None):
    """x: (N, C) float logits (f32 or bf16 -- feed bf16 directly, the kernel
    casts in-kernel); target: (N,) int class ids.  Returns scalar f32 mean loss.
    """
    n, c = x.shape
    itemsize = jnp.dtype(x.dtype).itemsize

    vmem_limit = _pick_vmem_limit_bytes()

    # Sublane packing: 8 rows for f32, 16 for bf16, 32 for int8/fp8.
    packing = max(8, 32 // itemsize)

    if tile_n is None:
        # Biggest tile that keeps the double-buffered logits block (dominant
        # VMEM consumer) inside the scoped limit with headroom.
        budget = max(vmem_limit - 4 * 1024 * 1024, 8 * 1024 * 1024)
        max_rows = max(packing, budget // (2 * c * itemsize))
        tile_n = min(n, 2048, max_rows)
    tile_n = min(tile_n, n)
    if n >= packing:
        tile_n = max(packing, (tile_n // packing) * packing)
    else:
        tile_n = n                          # tiny batch: one full block

    num_tiles = pl.cdiv(n, tile_n)

    # Split the batch reduction across (up to) two TensorCores; each core owns
    # its own accumulator + output block, the wrapper sums the partials.
    num_splits = 2 if num_tiles >= 2 else 1
    tiles_per_core = pl.cdiv(num_tiles, num_splits)
    needs_mask = (num_splits * tiles_per_core * tile_n) != n

    tgt2d = target.astype(jnp.int32).reshape(n, 1)

    def data_index_map(core, step):
        # Clamp so tiles past the real batch read valid (duplicate) data; the
        # in-kernel row mask (built from the UNclamped index) discards them.
        t = core * tiles_per_core + step
        return (jnp.minimum(t, num_tiles - 1), 0)

    kernel = functools.partial(
        _label_smoothing_kernel,
        smoothing=float(smoothing),
        n_total=n,
        tile_n=tile_n,
        tiles_per_core=tiles_per_core,
        needs_mask=needs_mask,
    )

    out = pl.pallas_call(
        kernel,
        out_shape=jax.ShapeDtypeStruct((num_splits * 8, 128), jnp.float32),
        grid=(num_splits, tiles_per_core),
        in_specs=[
            pl.BlockSpec((tile_n, c), data_index_map),
            pl.BlockSpec((tile_n, 1), data_index_map),
        ],
        out_specs=pl.BlockSpec((8, 128), lambda core, step: (core, 0)),
        scratch_shapes=[pltpu.SMEM((1,), jnp.float32)],
        compiler_params=pltpu.CompilerParams(
            dimension_semantics=("parallel", "arbitrary"),
            vmem_limit_bytes=vmem_limit,
        ),
        cost_estimate=pl.CostEstimate(
            flops=5 * n * c,
            transcendentals=n * c,
            bytes_accessed=n * c * itemsize + n * 4 + num_splits * 8 * 128 * 4,
        ),
    )(x, tgt2d)

    # Per-core partials already carry the 1/N factor; summing gives the mean.
    return jnp.sum(out[::8, 0])


if __name__ == "__main__":
    key = jax.random.PRNGKey(0)
    kx, kt = jax.random.split(key)

    # Small shapes, chosen so the grid has multiple tiles, a padded last tile,
    # and (with the 2-way core split) one fully out-of-range clamped tile.
    N, C = 40, 128
    x = jax.random.normal(kx, (N, C), dtype=jnp.float32)
    target = jax.random.randint(kt, (N,), 0, C, dtype=jnp.int32)

    def reference(xf, tgt, smoothing=0.1):
        logprob = jax.nn.log_softmax(xf.astype(jnp.float32), axis=-1)
        nll = -jnp.take_along_axis(logprob, tgt[:, None], axis=-1)[:, 0]
        smooth = -jnp.mean(logprob, axis=-1)
        return jnp.mean((1.0 - smoothing) * nll + smoothing * smooth)

    ref = reference(x, target)

    # Multi-tile + padded / clamped-tile path (explicit small tile).
    loss = label_smoothing_loss(x, target, smoothing=0.1, tile_n=16)
    jax.block_until_ready(loss)
    assert jnp.allclose(loss, ref, atol=1e-5, rtol=1e-5), (loss, ref)

    # Auto-tiled path (single full tile, 1-way split).
    loss2 = label_smoothing_loss(x, target, smoothing=0.1)
    jax.block_until_ready(loss2)
    assert jnp.allclose(loss2, ref, atol=1e-5, rtol=1e-5), (loss2, ref)

    # bf16 logits path (in-kernel f32 cast, 16-row sublane packing).
    xb = x.astype(jnp.bfloat16)
    ref_b = reference(xb, target)
    loss3 = label_smoothing_loss(xb, target, smoothing=0.1)
    jax.block_until_ready(loss3)
    assert jnp.allclose(loss3, ref_b, atol=1e-3, rtol=1e-3), (loss3, ref_b)

    print("KERNEL_OK")
</pallas_src>

<mosaic_0001>
module attributes {stable_mosaic.version = 11 : i64} {
  func.func @_label_smoothing_kernel(%arg0: i32, %arg1: i32, %arg2: memref<16x128xf32, #tpu.memory_space<vmem>>, %arg3: memref<16x1xi32, #tpu.memory_space<vmem>>, %arg4: memref<8x128xf32, #tpu.memory_space<vmem>>, %arg5: memref<1xf32, #tpu.memory_space<smem>>) attributes {dimension_semantics = [#tpu.dimension_semantics<parallel>, #tpu.dimension_semantics<arbitrary>], iteration_bounds = array<i64: 2, 2>, scalar_prefetch = 0 : i64, scratch_operands = 1 : i64, tpu.core_type = #tpu.core_type<tc>, window_params = [{transform_indices = @transform_0, window_bounds = array<i64: 16, 128>}, {transform_indices = @transform_1, window_bounds = array<i64: 16, 1>}, {transform_indices = @transform_2, window_bounds = array<i64: 8, 128>}]} {
    %c0_i32 = arith.constant 0 : i32
    %0 = arith.cmpi eq, %arg1, %c0_i32 : i32
    %1 = arith.extui %0 : i1 to i32
    %c0_i32_0 = arith.constant 0 : i32
    %2 = arith.cmpi ne, %1, %c0_i32_0 : i32
    scf.if %2 {
      %cst_13 = arith.constant 0.000000e+00 : f32
      %c0_14 = arith.constant 0 : index
      %44 = memref.load %arg5[%c0_14] : memref<1xf32, #tpu.memory_space<smem>>
      memref.store %cst_13, %arg5[%c0_14] : memref<1xf32, #tpu.memory_space<smem>>
    } else {
    }
    %c0 = arith.constant 0 : index
    %c0_1 = arith.constant 0 : index
    %3 = vector.load %arg2[%c0, %c0_1] : memref<16x128xf32, #tpu.memory_space<vmem>>, vector<16x128xf32>
    %cst = arith.constant dense<0xFF800000> : vector<16xf32>
    %4 = vector.multi_reduction <maximumf>, %3, %cst [1] : vector<16x128xf32> to vector<16xf32>
    %5 = vector.shape_cast %4 : vector<16xf32> to vector<16x1xf32>
    %6 = vector.broadcast %5 : vector<16x1xf32> to vector<16x128xf32>
    %7 = arith.subf %3, %6 : vector<16x128xf32>
    %8 = math.exp %7 : vector<16x128xf32>
    %cst_2 = arith.constant dense<0.000000e+00> : vector<16xf32>
    %9 = vector.multi_reduction <add>, %8, %cst_2 [1] : vector<16x128xf32> to vector<16xf32>
    %10 = vector.shape_cast %9 : vector<16xf32> to vector<16x1xf32>
    %11 = math.log %10 : vector<16x1xf32>
    %12 = arith.addf %11, %5 : vector<16x1xf32>
    %c0_3 = arith.constant 0 : index
    %c0_4 = arith.constant 0 : index
    %13 = vector.load %arg3[%c0_3, %c0_4] : memref<16x1xi32, #tpu.memory_space<vmem>>, vector<16x1xi32>
    %14 = tpu.iota {dimensions = array<i32: 1>} : vector<16x128xi32>
    %15 = vector.broadcast %13 : vector<16x1xi32> to vector<16x128xi32>
    %16 = arith.cmpi eq, %14, %15 : vector<16x128xi32>
    %cst_5 = arith.constant 0.900781273 : f32
    %cst_6 = arith.constant 7.812500e-04 : f32
    %17 = vector.broadcast %cst_5 : f32 to vector<16x128xf32>
    %18 = vector.broadcast %cst_6 : f32 to vector<16x128xf32>
    %19 = arith.select %16, %17, %18 : vector<16x128xi1>, vector<16x128xf32>
    %20 = arith.mulf %3, %19 : vector<16x128xf32>
    %cst_7 = arith.constant dense<0.000000e+00> : vector<16xf32>
    %21 = vector.multi_reduction <add>, %20, %cst_7 [1] : vector<16x128xf32> to vector<16xf32>
    %22 = vector.shape_cast %21 : vector<16xf32> to vector<16x1xf32>
    %23 = arith.subf %12, %22 : vector<16x1xf32>
    %c2_i32 = arith.constant 2 : i32
    %24 = arith.muli %arg0, %c2_i32 : i32
    %25 = arith.addi %24, %arg1 : i32
    %c16_i32 = arith.constant 16 : i32
    %26 = arith.muli %25, %c16_i32 : i32
    %27 = tpu.iota {dimensions = array<i32: 0>} : vector<16x1xi32>
    %28 = vector.broadcast %26 : i32 to vector<16x1xi32>
    %29 = arith.addi %28, %27 : vector<16x1xi32>
    %c40_i32 = arith.constant 40 : i32
    %30 = vector.broadcast %c40_i32 : i32 to vector<16x1xi32>
    %31 = arith.cmpi slt, %29, %30 : vector<16x1xi32>
    %cst_8 = arith.constant 0.000000e+00 : f32
    %32 = vector.broadcast %cst_8 : f32 to vector<16x1xf32>
    %33 = arith.select %31, %23, %32 : vector<16x1xi1>, vector<16x1xf32>
    %c0_9 = arith.constant 0 : index
    %34 = memref.load %arg5[%c0_9] : memref<1xf32, #tpu.memory_space<smem>>
    %35 = vector.shape_cast %33 : vector<16x1xf32> to vector<1x16x1xf32>
    %cst_10 = arith.constant dense<0.000000e+00> : vector<1xf32>
    %36 = vector.multi_reduction <add>, %35, %cst_10 [1, 2] : vector<1x16x1xf32> to vector<1xf32>
    %37 = vector.shape_cast %36 : vector<1xf32> to vector<1x1x1xf32>
    %38 = vector.extract %37[0, 0, 0] : f32 from vector<1x1x1xf32>
    %39 = arith.addf %34, %38 : f32
    %c0_11 = arith.constant 0 : index
    %40 = memref.load %arg5[%c0_11] : memref<1xf32, #tpu.memory_space<smem>>
    memref.store %39, %arg5[%c0_11] : memref<1xf32, #tpu.memory_space<smem>>
    %c1_i32 = arith.constant 1 : i32
    %41 = arith.cmpi eq, %arg1, %c1_i32 : i32
    %42 = arith.extui %41 : i1 to i32
    %c0_i32_12 = arith.constant 0 : i32
    %43 = arith.cmpi ne, %42, %c0_i32_12 : i32
    scf.if %43 {
      %c0_13 = arith.constant 0 : index
      %44 = memref.load %arg5[%c0_13] : memref<1xf32, #tpu.memory_space<smem>>
      %cst_14 = arith.constant 2.500000e-02 : f32
      %45 = arith.mulf %44, %cst_14 : f32
      %46 = vector.broadcast %45 : f32 to vector<8x128xf32>
      %c0_15 = arith.constant 0 : index
      %c0_16 = arith.constant 0 : index
      %47 = vector.load %arg4[%c0_15, %c0_16] : memref<8x128xf32, #tpu.memory_space<vmem>>, vector<8x128xf32>
      tpu.vector_store %arg4[%c0_15, %c0_16], %46 {strides = array<i32>} : memref<8x128xf32, #tpu.memory_space<vmem>>, vector<8x128xf32>,
    } else {
    }
    return
  }
  func.func @transform_0(%arg0: i32, %arg1: i32) -> (i32, i32) {
    %c2_i32 = arith.constant 2 : i32
    %0 = arith.muli %arg0, %c2_i32 : i32
    %1 = arith.addi %0, %arg1 : i32
    %c2_i32_0 = arith.constant 2 : i32
    %2 = arith.minsi %1, %c2_i32_0 : i32
    %c0_i32 = arith.constant 0 : i32
    %c0_i32_1 = arith.constant 0 : i32
    return %2, %c0_i32 : i32, i32
  }
  func.func @transform_1(%arg0: i32, %arg1: i32) -> (i32, i32) {
    %c2_i32 = arith.constant 2 : i32
    %0 = arith.muli %arg0, %c2_i32 : i32
    %1 = arith.addi %0, %arg1 : i32
    %c2_i32_0 = arith.constant 2 : i32
    %2 = arith.minsi %1, %c2_i32_0 : i32
    %c0_i32 = arith.constant 0 : i32
    %c0_i32_1 = arith.constant 0 : i32
    return %2, %c0_i32 : i32, i32
  }
  func.func @transform_2(%arg0: i32, %arg1: i32) -> (i32, i32) {
    %c0_i32 = arith.constant 0 : i32
    %c0_i32_0 = arith.constant 0 : i32
    return %arg0, %c0_i32 : i32, i32
  }
}

</mosaic_0001>

<llo_original>
// kernel: tpu_custom_call.1
$region0: #{tpu_custom_call.1}
  #allocation0 [shape = 'u32[]', space=smem, size = 0x4, offset = 0x4, fixed_abs, tag = 'smem constant byte address 0x4 - core index']
  #allocation1 [shape = 'u32[144,128]{1,0:T(1,128)}', space=vmem, size = 0x12000, scoped, tag = 'internal scratch']
  #allocation2 [shape = 'f32[1]{0:T(128)}', space=smem, size = 0x200, scoped, tag = 'scratch operand']
  %s0 = inlined_call_operand.vmem [shape: f32[40,128], index: 0, kind: input, shape index: {}]
  %s1 = inlined_call_operand.vmem [shape: s32[40,1], index: 1, kind: input, shape index: {}]
  %s2 = inlined_call_operand.hbm [shape: f32[16,128], index: 2, kind: output, shape index: {}]
  %s3 = sld [smem:[#allocation0]]
  $region49: #{tpu_custom_call.1} parent=0
    _
  %s5 = ssub.s32 1, %s3
  %s6 = scalar_select 0, %s5, %s3
  $region1: #{tpu_custom_call.1} parent=0
    #allocation3 [shape = 'u8[8192]{0}', space=vmem, size = 0x2000, scoped, tag = 'output window, operand 0']
    #allocation4 [shape = 's32[2]{0}', space=sflag, size = 0x8, scoped, tag = 'scoped memory for tpu_custom_call.1']
    %7 = vsyncpa [#allocation4], 0
    %s8 = scalar_lea.sflag [#allocation4], 1
    %9 = vsyncpa %s8, 0
    loop: start=0, step=1, limit=6
    $region2: #{tpu_custom_call.1} parent=1 // loop_pre_header
      _
    $region3: #{tpu_custom_call.1} parent=1 // loop_header
      %s11 = sphi 0, %s15
      %p12 = scmp.ge.s32.totalorder %s11, 6
      %s18 = sphi 0, %s30
      %s19 = sphi 0, %s26
      %s20 = sphi 0, %s18
      %s21 = sphi 0, %s19
      %s22 = sphi 0, %s20
      %s23 = sphi 0, %s21
      %s41 = sphi 0, %s43
      %s44 = sphi 0, %s41
      %s45 = sphi 0, %s44
      %s61 = sphi 0, %s45
      %s75 = sphi 0, %s77
      %s78 = sphi 0, %s75
      %s79 = sphi 0, %s78
      %s95 = sphi 0, %s79
      %s101 = sphi 0, %s103
      %s104 = sphi 0, %s101
      %s105 = sphi 0, %s104
      %s121 = sphi 0, %s105
    $region4: #{tpu_custom_call.1} parent=1 // loop_header_branch
      %14 = sbr.rel (%p12) target = $region8
    $region5: #{tpu_custom_call.1} parent=1 // loop_body
      %s16 = ssub.s32 %s11, 1
      %s17 = ssub.s32 %s11, 2
      %s24 = sadd.s32 1, %s19
      %p25 = scmp.ge.s32.totalorder %s24, 2
      %s26 = scalar_select %p25, 0, %s24
      %s27 = sadd.s32 1, %s18
      %s28 = scalar_select %p25, %s27, %s18
      %p29 = scmp.ge.s32.totalorder %s28, 2
      %s30 = scalar_select %p29, 0, %s28
      %s31 = smul.u32 %s18, 2
      %s32 = sadd.s32 %s31, %s19
      %p33 = scmp.lt.s32.totalorder %s32, 2
      %s34 = scalar_select %p33, %s32, 2
      %s35 = smul.u32 %s30, 2
      %s36 = sadd.s32 %s35, %s26
      %p37 = scmp.lt.s32.totalorder %s36, 2
      %s38 = scalar_select %p37, %s36, 2
      %s39 = ssub.s32 %s34, %s38
      %p40 = scmp.eq.s32.totalorder %s39, 0
      %s42 = sadd.s32 %s41, 1
      %s43 = scalar_select %p40, %s41, %s42
      %p46 = pneg %p40
      %p47 = scmp.eq.s32.totalorder %s11, 3
      %p48 = por %p46, %p47
      %p49 = scmp.ne.s32.totalorder %s41, %s44
      %p50 = scmp.eq.s32.totalorder %s11, 0
      %p51 = por %p49, %p50
      %p52 = scmp.ne.s32.totalorder %s41, %s44
      %p53 = scmp.eq.s32.totalorder %s16, 3
      %p54 = por %p52, %p53
      %p55 = scmp.ne.s32.totalorder %s44, %s45
      %p56 = scmp.eq.s32.totalorder %s16, 0
      %p57 = por %p55, %p56
      %p58 = scmp.ne.s32.totalorder %s44, %s45
      %p59 = scmp.eq.s32.totalorder %s17, 3
      %p60 = por %p58, %p59
      %p62 = scmp.ne.s32.totalorder %s45, %s61
      %p63 = scmp.eq.s32.totalorder %s17, 0
      %p64 = por %p62, %p63
      %s65 = smul.u32 %s18, 2
      %s66 = sadd.s32 %s65, %s19
      %p67 = scmp.lt.s32.totalorder %s66, 2
      %s68 = scalar_select %p67, %s66, 2
      %s69 = smul.u32 %s30, 2
      %s70 = sadd.s32 %s69, %s26
      %p71 = scmp.lt.s32.totalorder %s70, 2
      %s72 = scalar_select %p71, %s70, 2
      %s73 = ssub.s32 %s68, %s72
      %p74 = scmp.eq.s32.totalorder %s73, 0
      %s76 = sadd.s32 %s75, 1
      %s77 = scalar_select %p74, %s75, %s76
      %p80 = pneg %p74
      %p81 = scmp.eq.s32.totalorder %s11, 3
      %p82 = por %p80, %p81
      %p83 = scmp.ne.s32.totalorder %s75, %s78
      %p84 = scmp.eq.s32.totalorder %s11, 0
      %p85 = por %p83, %p84
      %p86 = scmp.ne.s32.totalorder %s75, %s78
      %p87 = scmp.eq.s32.totalorder %s16, 3
      %p88 = por %p86, %p87
      %p89 = scmp.ne.s32.totalorder %s78, %s79
      %p90 = scmp.eq.s32.totalorder %s16, 0
      %p91 = por %p89, %p90
      %p92 = scmp.ne.s32.totalorder %s78, %s79
      %p93 = scmp.eq.s32.totalorder %s17, 3
      %p94 = por %p92, %p93
      %p96 = scmp.ne.s32.totalorder %s79, %s95
      %p97 = scmp.eq.s32.totalorder %s17, 0
      %p98 = por %p96, %p97
      %s99 = ssub.s32 %s18, %s30
      %p100 = scmp.eq.s32.totalorder %s99, 0
      %s102 = sadd.s32 %s101, 1
      %s103 = scalar_select %p100, %s101, %s102
      %p106 = pneg %p100
      %p107 = scmp.eq.s32.totalorder %s11, 3
      %p108 = por %p106, %p107
      %p109 = scmp.ne.s32.totalorder %s101, %s104
      %p110 = scmp.eq.s32.totalorder %s11, 0
      %p111 = por %p109, %p110
      %p112 = scmp.ne.s32.totalorder %s101, %s104
      %p113 = scmp.eq.s32.totalorder %s16, 3
      %p114 = por %p112, %p113
      %p115 = scmp.ne.s32.totalorder %s104, %s105
      %p116 = scmp.eq.s32.totalorder %s16, 0
      %p117 = por %p115, %p116
      %p118 = scmp.ne.s32.totalorder %s104, %s105
      %p119 = scmp.eq.s32.totalorder %s17, 3
      %p120 = por %p118, %p119
      %p122 = scmp.ne.s32.totalorder %s105, %s121
      %p123 = scmp.eq.s32.totalorder %s17, 0
      %p124 = por %p122, %p123
      %p125 = scmp.le.s32.totalorder 1, %s11
      %p126 = scmp.lt.s32.totalorder %s11, 5
      %p127 = pnand %p125, %p126
      %p128 = pneg %p127
      // Predicated region
      $region9: #{tpu_custom_call.1} parent=5 // pred_check
        _
      $region10: #{tpu_custom_call.1} parent=5 // pred_check_branch
        %130 = sbr.rel (%p127) target = $region12
      $region11: #{tpu_custom_call.1} parent=5 // pred_region
        %s131 = ssub.s32 %s11, 1
      $region12: #{tpu_custom_call.1} parent=5 // pred_fallthru
        _
      %p132 = scmp.lt.s32.totalorder %s11, 4
      // Predicated region
      $region13: #{tpu_custom_call.1} parent=5 // pred_check
        %p133 = pneg %p132
      $region14: #{tpu_custom_call.1} parent=5 // pred_check_branch
        %135 = sbr.rel (%p133) target = $region16
      $region15: #{tpu_custom_call.1} parent=5 // pred_region
        // Predicated region
        $region17: #{tpu_custom_call.1} parent=15 // pred_check
          %p136 = pneg %p51
        $region18: #{tpu_custom_call.1} parent=15 // pred_check_branch
          %138 = sbr.rel (%p136) target = $region20
        $region19: #{tpu_custom_call.1} parent=15 // pred_region
          %s139 = smul.u32 %s18, 2
          %s140 = sadd.s32 %s139, %s19
          %p141 = scmp.lt.s32.totalorder %s140, 2
          %s142 = scalar_select %p141, %s140, 2
          %s143 = smul.u32 2, %s142
          %s144 = ssub.s32 5, %s143
          %p145 = scmp.lt.s32.totalorder %s144, 2
          %s146 = scalar_select %p145, %s144, 2
          %s147 = smul.u32 128, %s146
          %p148 = scmp.lt.s32.totalorder %s143, 4
          %s149 = scalar_select %p148, %s143, 4
          %s150 = smul.addr %s149, 8
          %s151 = scalar_lea.vmem %s0, %s150
          %s152 = smul.u32 %s18, 2
          %s153 = sadd.s32 %s152, %s19
          %p154 = scmp.lt.s32.totalorder %s153, 2
          %s155 = scalar_select %p154, %s153, 2
          %s156 = smul.u32 2, %s155
          %s157 = ssub.s32 5, %s156
          %p158 = scmp.lt.s32.totalorder %s157, 2
          %s159 = scalar_select %p158, %s157, 2
          %s160 = smul.u32 128, %s159
        $region20: #{tpu_custom_call.1} parent=15 // pred_fallthru
          _
        // Predicated region
        $region21: #{tpu_custom_call.1} parent=15 // pred_check
          %p161 = pneg %p85
        $region22: #{tpu_custom_call.1} parent=15 // pred_check_branch
          %163 = sbr.rel (%p161) target = $region24
        $region23: #{tpu_custom_call.1} parent=15 // pred_region
          %s164 = smul.u32 %s18, 2
          %s165 = sadd.s32 %s164, %s19
          %p166 = scmp.lt.s32.totalorder %s165, 2
          %s167 = scalar_select %p166, %s165, 2
          %s168 = smul.u32 2, %s167
          %s169 = ssub.s32 5, %s168
          %p170 = scmp.lt.s32.totalorder %s169, 2
          %s171 = scalar_select %p170, %s169, 2
          %s172 = smul.u32 128, %s171
          %p173 = scmp.lt.s32.totalorder %s168, 4
          %s174 = scalar_select %p173, %s168, 4
          %s175 = smul.addr %s174, 8
          %s176 = scalar_lea.vmem %s1, %s175
          %s177 = smul.u32 %s18, 2
          %s178 = sadd.s32 %s177, %s19
          %p179 = scmp.lt.s32.totalorder %s178, 2
          %s180 = scalar_select %p179, %s178, 2
          %s181 = smul.u32 2, %s180
          %s182 = ssub.s32 5, %s181
          %p183 = scmp.lt.s32.totalorder %s182, 2
          %s184 = scalar_select %p183, %s182, 2
          %s185 = smul.u32 128, %s184
        $region24: #{tpu_custom_call.1} parent=15 // pred_fallthru
          _
      $region16: #{tpu_custom_call.1} parent=5 // pred_fallthru
        _
      %p186 = scmp.le.s32.totalorder 1, %s11
      %p187 = scmp.lt.s32.totalorder %s11, 5
      %p188 = pnand %p186, %p187
      %p189 = pneg %p188
      // Predicated region
      $region25: #{tpu_custom_call.1} parent=5 // pred_check
        _
      $region26: #{tpu_custom_call.1} parent=5 // pred_check_branch
        %191 = sbr.rel (%p188) target = $region28
      $region27: #{tpu_custom_call.1} parent=5 // pred_region
        %s192 = ssub.s32 %s11, 1
        %s193 = smul.u32 %s20, 2
        %s194 = sadd.s32 %s193, %s21
        %p195 = scmp.lt.s32.totalorder %s194, 2
        %s196 = scalar_select %p195, %s194, 2
        %s197 = smul.u32 2, %s196
        %s198 = ssub.s32 5, %s197
        %p199 = scmp.lt.s32.totalorder %s198, 2
        %s200 = scalar_select %p199, %s198, 2
        %s201 = smul.u32 128, %s200
        %p202 = scmp.lt.s32.totalorder %s197, 4
        %s203 = scalar_select %p202, %s197, 4
        %s204 = smul.addr %s203, 8
        %s205 = scalar_lea.vmem %s0, %s204
        %p206 = pneg %p57
        %p207 = pneg %p54
        %s208 = smul.u32 %s20, 2
        %s209 = sadd.s32 %s208, %s21
        %p210 = scmp.lt.s32.totalorder %s209, 2
        %s211 = scalar_select %p210, %s209, 2
        %s212 = smul.u32 2, %s211
        %s213 = ssub.s32 5, %s212
        %p214 = scmp.lt.s32.totalorder %s213, 2
        %s215 = scalar_select %p214, %s213, 2
        %s216 = smul.u32 128, %s215
        %p217 = scmp.lt.s32.totalorder %s212, 4
        %s218 = scalar_select %p217, %s212, 4
        %s219 = smul.addr %s218, 8
        %s220 = scalar_lea.vmem %s1, %s219
        %p221 = pneg %p91
        %p222 = pneg %p88
        %p223 = pneg %p117
        %p224 = pneg %p114
        %s225 = sand.u32 %s104, 1
        %s226 = scalar_lea.sflag [#allocation4], %s225
        %s227 = sand.u32 %s104, 1
        %s228 = smul.addr %s227, 8
        %s229 = scalar_lea.vmem [#allocation3], %s228
        %s230 = smul.u32 %s20, 2
        %s231 = sadd.s32 %s230, %s21
        %p232 = scmp.lt.s32.totalorder %s231, 2
        %s233 = scalar_select %p232, %s231, 2
        %s234 = smul.u32 2, %s233
        %s235 = ssub.s32 5, %s234
        %p236 = scmp.lt.s32.totalorder %s235, 2
        %s237 = scalar_select %p236, %s235, 2
        %s238 = smul.u32 128, %s237
        %p239 = scmp.lt.s32.totalorder %s234, 4
        %s240 = scalar_select %p239, %s234, 4
        %s241 = smul.addr %s240, 8
        %s242 = scalar_lea.vmem %s0, %s241
        %s243 = smul.u32 %s20, 2
        %s244 = sadd.s32 %s243, %s21
        %p245 = scmp.lt.s32.totalorder %s244, 2
        %s246 = scalar_select %p245, %s244, 2
        %s247 = smul.u32 2, %s246
        %s248 = ssub.s32 5, %s247
        %p249 = scmp.lt.s32.totalorder %s248, 2
        %s250 = scalar_select %p249, %s248, 2
        %s251 = smul.u32 128, %s250
        %s252 = smul.u32 %s20, 2
        %s253 = sadd.s32 %s252, %s21
        %p254 = scmp.lt.s32.totalorder %s253, 2
        %s255 = scalar_select %p254, %s253, 2
        %s256 = smul.u32 2, %s255
        %s257 = ssub.s32 5, %s256
        %p258 = scmp.lt.s32.totalorder %s257, 2
        %s259 = scalar_select %p258, %s257, 2
        %s260 = smul.u32 128, %s259
        %p261 = scmp.lt.s32.totalorder %s256, 4
        %s262 = scalar_select %p261, %s256, 4
        %s263 = smul.addr %s262, 8
        %s264 = scalar_lea.vmem %s1, %s263
        %s265 = smul.u32 %s20, 2
        %s266 = sadd.s32 %s265, %s21
        %p267 = scmp.lt.s32.totalorder %s266, 2
        %s268 = scalar_select %p267, %s266, 2
        %s269 = smul.u32 2, %s268
        %s270 = ssub.s32 5, %s269
        %p271 = scmp.lt.s32.totalorder %s270, 2
        %s272 = scalar_select %p271, %s270, 2
        %s273 = smul.u32 128, %s272
        %p274 = scmp.eq.s32.totalorder %s21, 0
        // Predicated region
        $region29: #{tpu_custom_call.1} parent=27 // pred_check
          %p275 = pneg %p274
        $region30: #{tpu_custom_call.1} parent=27 // pred_check_branch
          %277 = sbr.rel (%p275) target = $region32
        $region31: #{tpu_custom_call.1} parent=27 // pred_region
          %s278 = scalar_lea.smem [#allocation2], 0
          %279 = sst [smem:[%s278]] 0.0
        $region32: #{tpu_custom_call.1} parent=27 // pred_fallthru
          _
        %v280 = vld [vmem:[%s242] sm:$0xff]
        %v281 = vld [vmem:[%s242 + $0x8] sm:$0xff]
        %282 = vmax.xlane.f32.xlu0 %v280
        %v283 = vpop.xlane.xlu0 %282
        %284 = vmax.xlane.f32.xlu0 %v281
        %v285 = vpop.xlane.xlu0 %284
        %v286 = vsub.f32 %v280, %v283
        %v287 = vsub.f32 %v281, %v285
        %v288 = vmul.f32 %v286, 1.442695
        %v289 = vpow.pop %v288
        %v290 = vmul.f32 %v287, 1.442695
        %v291 = vpow.pop %v290
        %292 = vadd.xlane.f32.xlu0 %v289
        %v293 = vpop.xlane.xlu0 %292
        %294 = vadd.xlane.f32.xlu0 %v291
        %v295 = vpop.xlane.xlu0 %294
        %v296 = vlog2.pop %v293
        %v297 = vmul.f32 %v296, 0.6931472
        %v298 = vlog2.pop %v295
        %v299 = vmul.f32 %v298, 0.6931472
        %v300 = vadd.f32 %v297, %v283
        %v301 = vadd.f32 %v299, %v285
        %v302 = vld [vmem:[%s264] sm:$0xff]
        %v303 = vld [vmem:[%s264 + $0x8] sm:$0xff]
        %v304 = vlaneseq
        %v305 = vand.u32 %v304, 127
        %306 = vset.pattern.permute.xlu0 0
        %307 = vperm.xlu0 %306, %v302
        %v308 = vpop.permute.xlu0 %307
        %309 = vset.pattern.permute.xlu0 0
        %310 = vperm.xlu0 %309, %v303
        %v311 = vpop.permute.xlu0 %310
        %vm312 = vcmp.eq.s32.totalorder %v305, %v308
        %vm313 = vcmp.eq.s32.totalorder %v305, %v311
        %v314 = vsel %vm312, 0.9007813, 0.00078125
        %v315 = vsel %vm313, 0.9007813, 0.00078125
        %v316 = vmul.f32 %v280, %v314
        %v317 = vmul.f32 %v281, %v315
        %318 = vadd.xlane.f32.xlu0 %v316
        %v319 = vpop.xlane.xlu0 %318
        %320 = vadd.xlane.f32.xlu0 %v317
        %v321 = vpop.xlane.xlu0 %320
        %v322 = vsub.f32 %v300, %v319
        %v323 = vsub.f32 %v301, %v321
        %s324 = smul.u32 %s20, 2
        %s325 = sadd.s32 %s324, %s21
        %s326 = smul.u32 %s325, 16
        %v327 = vlaneseq
        %v328 = vshrl.u32 %v327, 7
        %v329 = vadd.s32 %v328, 8
        %v330 = vstv %s326
        %v331 = vadd.s32 %v330, %v328
        %v332 = vadd.s32 %v330, %v329
        %vm333 = vcmp.lt.s32.totalorder %v331, 40
        %vm334 = vcmp.lt.s32.totalorder %v332, 40
        %v335 = vsel %vm333, %v322, 0.0
        %v336 = vsel %vm334, %v323, 0.0
        %s337 = sld [smem:[#allocation2]]
        %vm338 = vcmask 7168
        %v339 = vsel %vm338, %v335, 0.0
        %v340 = vsel %vm338, %v336, 0.0
        %v341 = vadd.f32 %v339, %v340
        %342 = vadd.xlane.f32.xlu0 %v341
        %v343 = vpop.xlane.xlu0 %342
        %v344 = vrot.slane %v343, 4
        %v345 = vadd.f32 %v343, %v344
        %v346 = vrot.slane %v345, 2
        %v347 = vadd.f32 %v345, %v346
        %v348 = vrot.slane %v347, 1
        %v349 = vadd.f32 %v347, %v348
        %s350 = vtos %v349
        %s351 = sadd.f32 %s337, %s350
        %s352 = scalar_lea.smem [#allocation2], 0
        %353 = sst [smem:[%s352]] %s351
        %p354 = scmp.eq.s32.totalorder %s21, 1
        // Predicated region
        $region33: #{tpu_custom_call.1} parent=27 // pred_check
          %p355 = pneg %p354
        $region34: #{tpu_custom_call.1} parent=27 // pred_check_branch
          %357 = sbr.rel (%p355) target = $region36
        $region35: #{tpu_custom_call.1} parent=27 // pred_region
          %s358 = sld [smem:[#allocation2]]
          %s359 = smul.f32 %s358, 0.025
          %v360 = vstv %s359
          %361 = vst [vmem:[%s229] sm:$0xff] %v360
        $region36: #{tpu_custom_call.1} parent=27 // pred_fallthru
          _
        %s362 = sand.u32 %s104, 1
        %s363 = scalar_lea.sflag [#allocation4], %s362
        %s364 = sand.u32 %s104, 1
        %s365 = smul.addr %s364, 8
        %s366 = scalar_lea.vmem [#allocation3], %s365
        // Predicated region
        $region37: #{tpu_custom_call.1} parent=27 // pred_check
          %p367 = pneg %p114
        $region38: #{tpu_custom_call.1} parent=27 // pred_check_branch
          %369 = sbr.rel (%p367) target = $region40
        $region39: #{tpu_custom_call.1} parent=27 // pred_region
          %s371 = ssub.s32 128, 128
          %372 = vsyncadd %s363, %s371
          %s373 = smul.addr %s20, 128
          %s374 = scalar_lea.hbm %s2, %s373
          %s376 = sshll.u32 %s366, 4
          %s377 = int_to_ptr.vmem [resolvable:$true] %s376
          %379 = dma.vmem_to_hbm [thread:$0]  %s377, 128, %s374, %s363
        $region40: #{tpu_custom_call.1} parent=27 // pred_fallthru
          _
      $region28: #{tpu_custom_call.1} parent=5 // pred_fallthru
        _
      %p380 = scmp.le.s32.totalorder 2, %s11
      // Predicated region
      $region41: #{tpu_custom_call.1} parent=5 // pred_check
        %p381 = pneg %p380
      $region42: #{tpu_custom_call.1} parent=5 // pred_check_branch
        %383 = sbr.rel (%p381) target = $region44
      $region43: #{tpu_custom_call.1} parent=5 // pred_region
        %s384 = ssub.s32 %s11, 2
        // Predicated region
        $region45: #{tpu_custom_call.1} parent=43 // pred_check
          %p385 = pneg %p120
        $region46: #{tpu_custom_call.1} parent=43 // pred_check_branch
          %387 = sbr.rel (%p385) target = $region48
        $region47: #{tpu_custom_call.1} parent=43 // pred_region
          %s388 = sand.u32 %s105, 1
          %s389 = scalar_lea.sflag [#allocation4], %s388
          %s390 = sand.u32 %s105, 1
          %s391 = smul.addr %s390, 8
          %s392 = scalar_lea.vmem [#allocation3], %s391
          %393 = dma.done %s389, 128
        $region48: #{tpu_custom_call.1} parent=43 // pred_fallthru
          _
      $region44: #{tpu_custom_call.1} parent=5 // pred_fallthru
        _
    $region6: #{tpu_custom_call.1} parent=1 // loop_footer
      %s15 = sadd.s32 1, %s11
    $region7: #{tpu_custom_call.1} parent=1 // loop_footer_branch
      %10 = sbr.rel target = $region3
    $region8: #{tpu_custom_call.1} parent=1 // loop_exit
      _
    %394 = vsyncpa [#allocation4], 1
    %s395 = scalar_lea.sflag [#allocation4], 1
    %396 = vsyncpa %s395, 1

</llo_original>
